<compile_context>
chip_gen: v7x
topology: tpu7x:2x2x1
jax: 0.10.0
libtpu: 0.0.40
codegen_flags: <defaults>
</compile_context>

<pallas_src>
import functools

import jax
import jax.numpy as jnp
from jax.experimental import pallas as pl
from jax.experimental.pallas import tpu as pltpu


def _baseline_kernel(x_ref, wT_ref, b_ref, feat_ref, gap_ref, acc_ref, *, inv_hw):
    # x_ref:    (1, Cin, T_HW)    spatial tile of one batch element (NCHW layout)
    # wT_ref:   (T_COUT, Cin)     transposed 1x1-conv weight tile (resident)
    # b_ref:    (T_COUT, 1)       bias tile (resident)
    # feat_ref: (1, T_COUT, T_HW) backbone feature-map tile ("base_out", NCHW)
    # gap_ref:  (1, T_COUT, 1)    global-average-pooled feature (accumulator out)
    # acc_ref:  (T_COUT, 1)       f32 VMEM scratch accumulator for the GAP sum
    hw = pl.program_id(2)
    n_hw = pl.num_programs(2)

    @pl.when(hw == 0)
    def _():
        acc_ref[...] = jnp.zeros_like(acc_ref)

    x = x_ref[0]                                            # (Cin, T_HW)
    y = jnp.dot(wT_ref[...], x,
                preferred_element_type=jnp.float32)         # (T_COUT, T_HW) on MXU
    y = y + b_ref[...]                                      # broadcast (T_COUT, 1)
    y = jnp.maximum(y, 0.0)                                 # ReLU
    feat_ref[0] = y.astype(feat_ref.dtype)                  # lane-dense store (HW last)

    # AdaptiveAvgPool2d(1): accumulate spatial sum, scale once at the end.
    acc_ref[...] += jnp.sum(y, axis=-1, keepdims=True)      # (T_COUT, 1)

    @pl.when(hw == n_hw - 1)
    def _():
        gap_ref[0] = (acc_ref[...] * inv_hw).astype(gap_ref.dtype)


def _pick_tile(total, cap, quantum):
    """Largest exact divisor of `total` that is <= cap and a multiple of
    `quantum`; falls back to `total` (single tile) if none exists."""
    if total <= cap:
        return total
    t = (cap // quantum) * quantum
    while t >= quantum:
        if total % t == 0:
            return t
        t -= quantum
    return total


def baseline_forward(x_nchw, w, b, *, t_hw=None, t_cout=None):
    """x_nchw: (N, Cin, H, W); w: (Cin, Cout); b: (Cout,).
    Returns (base_out [N, Cout, H, W], global_feat [N, Cout])."""
    N, Cin, H, W = x_nchw.shape
    Cout = w.shape[1]
    HW = H * W

    if t_hw is None:
        t_hw = _pick_tile(HW, 2048, 128)     # lane axis: multiples of 128
    if t_cout is None:
        t_cout = _pick_tile(Cout, 256, 8)    # sublane axis: multiples of 8
    assert HW % t_hw == 0 and Cout % t_cout == 0

    # NCHW -> (N, Cin, H*W): contiguous reshape, no HBM transpose pass.
    x_flat = x_nchw.reshape(N, Cin, HW)
    wT = jnp.transpose(w, (1, 0))            # (Cout, Cin), tiny
    b2 = b.reshape(Cout, 1)
    inv_hw = 1.0 / float(HW)

    kernel = functools.partial(_baseline_kernel, inv_hw=inv_hw)

    feat_flat, gap = pl.pallas_call(
        kernel,
        out_shape=(
            jax.ShapeDtypeStruct((N, Cout, HW), x_nchw.dtype),
            jax.ShapeDtypeStruct((N, Cout, 1), x_nchw.dtype),
        ),
        grid_spec=pltpu.PrefetchScalarGridSpec(
            num_scalar_prefetch=0,
            grid=(N, Cout // t_cout, HW // t_hw),     # reduction (HW) axis last
            in_specs=[
                pl.BlockSpec((1, Cin, t_hw), lambda n, c, hw: (n, 0, hw)),
                pl.BlockSpec((t_cout, Cin), lambda n, c, hw: (c, 0)),
                pl.BlockSpec((t_cout, 1), lambda n, c, hw: (c, 0)),
            ],
            out_specs=[
                pl.BlockSpec((1, t_cout, t_hw), lambda n, c, hw: (n, c, hw)),
                # same block across the HW axis -> resident accumulator output
                pl.BlockSpec((1, t_cout, 1), lambda n, c, hw: (n, c, 0)),
            ],
            scratch_shapes=[pltpu.VMEM((t_cout, 1), jnp.float32)],
        ),
        compiler_params=pltpu.CompilerParams(
            dimension_semantics=("parallel", "parallel", "arbitrary"),
            vmem_limit_bytes=32 * 1024 * 1024,
        ),
    )(x_flat, wT, b2)

    base_out = feat_flat.reshape(N, Cout, H, W)   # already NCHW, free reshape
    global_feat = gap[..., 0]                     # view(N, -1) -> (N, Cout)
    return base_out, global_feat


if __name__ == "__main__":
    key = jax.random.PRNGKey(0)
    k_x, k_w, k_b = jax.random.split(key, 3)

    # Small shapes consistent with the forward: NCHW input, in_planes reduced to 32.
    N, Cin, H, W = 2, 4, 16, 16
    in_planes = 32

    x = jax.random.normal(k_x, (N, Cin, H, W), dtype=jnp.float32)
    w = (jax.random.normal(k_w, (Cin, in_planes), dtype=jnp.float32)
         * (1.0 / jnp.sqrt(Cin)))
    b = jax.random.normal(k_b, (in_planes,), dtype=jnp.float32) * 0.01

    # t_hw=128 -> 2 spatial tiles: exercises the GAP accumulator path.
    base_out, global_feat = baseline_forward(x, w, b, t_hw=128)
    jax.block_until_ready((base_out, global_feat))

    # Also run the default (single-tile) tiling path.
    base_out2, global_feat2 = baseline_forward(x, w, b)
    jax.block_until_ready((base_out2, global_feat2))

    # Cheap sanity check against plain-JAX reference.
    ref_feat = jnp.maximum(
        jnp.einsum("nchw,cd->ndhw", x, w) + b[None, :, None, None], 0.0)
    ref_gap = jnp.mean(ref_feat, axis=(2, 3))
    assert base_out.shape == (N, in_planes, H, W)
    assert global_feat.shape == (N, in_planes)
    assert jnp.allclose(base_out, ref_feat, atol=1e-5, rtol=1e-5)
    assert jnp.allclose(global_feat, ref_gap, atol=1e-5, rtol=1e-5)
    assert jnp.allclose(base_out2, ref_feat, atol=1e-5, rtol=1e-5)
    assert jnp.allclose(global_feat2, ref_gap, atol=1e-5, rtol=1e-5)

    print("KERNEL_OK")
</pallas_src>

<mosaic_0001>
module attributes {stable_mosaic.version = 11 : i64} {
  func.func @_baseline_kernel(%arg0: i32, %arg1: i32, %arg2: i32, %arg3: memref<1x4x128xf32, #tpu.memory_space<vmem>>, %arg4: memref<32x4xf32, #tpu.memory_space<vmem>>, %arg5: memref<32x1xf32, #tpu.memory_space<vmem>>, %arg6: memref<1x32x128xf32, #tpu.memory_space<vmem>>, %arg7: memref<1x32x1xf32, #tpu.memory_space<vmem>>, %arg8: memref<32x1xf32, #tpu.memory_space<vmem>>) attributes {dimension_semantics = [#tpu.dimension_semantics<parallel>, #tpu.dimension_semantics<parallel>, #tpu.dimension_semantics<arbitrary>], iteration_bounds = array<i64: 2, 1, 2>, scalar_prefetch = 0 : i64, scratch_operands = 1 : i64, tpu.core_type = #tpu.core_type<tc>, window_params = [{transform_indices = @transform_0, window_bounds = array<i64: 1, 4, 128>}, {transform_indices = @transform_1, window_bounds = array<i64: 32, 4>}, {transform_indices = @transform_2, window_bounds = array<i64: 32, 1>}, {transform_indices = @transform_3, window_bounds = array<i64: 1, 32, 128>}, {transform_indices = @transform_4, window_bounds = array<i64: 1, 32, 1>}]} {
    %c0_i32 = arith.constant 0 : i32
    %0 = arith.cmpi eq, %arg2, %c0_i32 : i32
    %1 = arith.extui %0 : i1 to i32
    %c0_i32_0 = arith.constant 0 : i32
    %2 = arith.cmpi ne, %1, %c0_i32_0 : i32
    scf.if %2 {
      %cst_17 = arith.constant 0.000000e+00 : f32
      %23 = vector.broadcast %cst_17 : f32 to vector<32x1xf32>
      %c0_18 = arith.constant 0 : index
      %c0_19 = arith.constant 0 : index
      %24 = vector.load %arg8[%c0_18, %c0_19] : memref<32x1xf32, #tpu.memory_space<vmem>>, vector<32x1xf32>
      tpu.vector_store %arg8[%c0_18, %c0_19], %23 {strides = array<i32>} : memref<32x1xf32, #tpu.memory_space<vmem>>, vector<32x1xf32>,
    } else {
    }
    %c0 = arith.constant 0 : index
    %c0_1 = arith.constant 0 : index
    %c0_2 = arith.constant 0 : index
    %3 = vector.load %arg3[%c0, %c0_1, %c0_2] : memref<1x4x128xf32, #tpu.memory_space<vmem>>, vector<1x4x128xf32>
    %4 = vector.shape_cast %3 : vector<1x4x128xf32> to vector<4x128xf32>
    %c0_3 = arith.constant 0 : index
    %c0_4 = arith.constant 0 : index
    %5 = vector.load %arg4[%c0_3, %c0_4] : memref<32x4xf32, #tpu.memory_space<vmem>>, vector<32x4xf32>
    %cst = arith.constant dense<0.000000e+00> : vector<32x128xf32>
    %6 = tpu.matmul %5, %4, %cst {dimension_numbers = #tpu.dot_dimension_numbers<[1], [0], [0], [1], [0, 0, 1, 1], [], []>} : vector<32x4xf32>, vector<4x128xf32>, vector<32x128xf32> -> vector<32x128xf32>
    %c0_5 = arith.constant 0 : index
    %c0_6 = arith.constant 0 : index
    %7 = vector.load %arg5[%c0_5, %c0_6] : memref<32x1xf32, #tpu.memory_space<vmem>>, vector<32x1xf32>
    %8 = vector.broadcast %7 : vector<32x1xf32> to vector<32x128xf32>
    %9 = arith.addf %6, %8 : vector<32x128xf32>
    %cst_7 = arith.constant 0.000000e+00 : f32
    %10 = vector.broadcast %cst_7 : f32 to vector<32x128xf32>
    %11 = arith.maximumf %9, %10 : vector<32x128xf32>
    %c0_8 = arith.constant 0 : index
    %c0_9 = arith.constant 0 : index
    %c0_10 = arith.constant 0 : index
    %12 = vector.load %arg6[%c0_8, %c0_9, %c0_10] : memref<1x32x128xf32, #tpu.memory_space<vmem>>, vector<1x32x128xf32>
    %13 = vector.shape_cast %12 : vector<1x32x128xf32> to vector<32x128xf32>
    %14 = vector.shape_cast %11 : vector<32x128xf32> to vector<1x32x128xf32>
    tpu.vector_store %arg6[%c0_8, %c0_9, %c0_10], %14 {strides = array<i32>} : memref<1x32x128xf32, #tpu.memory_space<vmem>>, vector<1x32x128xf32>,
    %c0_11 = arith.constant 0 : index
    %c0_12 = arith.constant 0 : index
    %15 = vector.load %arg8[%c0_11, %c0_12] : memref<32x1xf32, #tpu.memory_space<vmem>>, vector<32x1xf32>
    %cst_13 = arith.constant dense<0.000000e+00> : vector<32xf32>
    %16 = vector.multi_reduction <add>, %11, %cst_13 [1] : vector<32x128xf32> to vector<32xf32>
    %17 = vector.shape_cast %16 : vector<32xf32> to vector<32x1xf32>
    %18 = arith.addf %15, %17 : vector<32x1xf32>
    %c0_14 = arith.constant 0 : index
    %c0_15 = arith.constant 0 : index
    %19 = vector.load %arg8[%c0_14, %c0_15] : memref<32x1xf32, #tpu.memory_space<vmem>>, vector<32x1xf32>
    tpu.vector_store %arg8[%c0_14, %c0_15], %18 {strides = array<i32>} : memref<32x1xf32, #tpu.memory_space<vmem>>, vector<32x1xf32>,
    %c1_i32 = arith.constant 1 : i32
    %20 = arith.cmpi eq, %arg2, %c1_i32 : i32
    %21 = arith.extui %20 : i1 to i32
    %c0_i32_16 = arith.constant 0 : i32
    %22 = arith.cmpi ne, %21, %c0_i32_16 : i32
    scf.if %22 {
      %c0_17 = arith.constant 0 : index
      %c0_18 = arith.constant 0 : index
      %23 = vector.load %arg8[%c0_17, %c0_18] : memref<32x1xf32, #tpu.memory_space<vmem>>, vector<32x1xf32>
      %cst_19 = arith.constant 3.906250e-03 : f32
      %24 = vector.broadcast %cst_19 : f32 to vector<32x1xf32>
      %25 = arith.mulf %23, %24 : vector<32x1xf32>
      %c0_20 = arith.constant 0 : index
      %c0_21 = arith.constant 0 : index
      %c0_22 = arith.constant 0 : index
      %26 = vector.load %arg7[%c0_20, %c0_21, %c0_22] : memref<1x32x1xf32, #tpu.memory_space<vmem>>, vector<1x32x1xf32>
      %27 = vector.shape_cast %26 : vector<1x32x1xf32> to vector<32x1xf32>
      %28 = vector.shape_cast %25 : vector<32x1xf32> to vector<1x32x1xf32>
      tpu.vector_store %arg7[%c0_20, %c0_21, %c0_22], %28 {strides = array<i32>} : memref<1x32x1xf32, #tpu.memory_space<vmem>>, vector<1x32x1xf32>,
    } else {
    }
    return
  }
  func.func @transform_0(%arg0: i32, %arg1: i32, %arg2: i32) -> (i32, i32, i32) {
    %c0_i32 = arith.constant 0 : i32
    %c0_i32_0 = arith.constant 0 : i32
    return %arg0, %c0_i32, %arg2 : i32, i32, i32
  }
  func.func @transform_1(%arg0: i32, %arg1: i32, %arg2: i32) -> (i32, i32) {
    %c0_i32 = arith.constant 0 : i32
    %c0_i32_0 = arith.constant 0 : i32
    return %arg1, %c0_i32 : i32, i32
  }
  func.func @transform_2(%arg0: i32, %arg1: i32, %arg2: i32) -> (i32, i32) {
    %c0_i32 = arith.constant 0 : i32
    %c0_i32_0 = arith.constant 0 : i32
    return %arg1, %c0_i32 : i32, i32
  }
  func.func @transform_3(%arg0: i32, %arg1: i32, %arg2: i32) -> (i32, i32, i32) {
    %c0_i32 = arith.constant 0 : i32
    return %arg0, %arg1, %arg2 : i32, i32, i32
  }
  func.func @transform_4(%arg0: i32, %arg1: i32, %arg2: i32) -> (i32, i32, i32) {
    %c0_i32 = arith.constant 0 : i32
    %c0_i32_0 = arith.constant 0 : i32
    return %arg0, %arg1, %c0_i32 : i32, i32, i32
  }
}

</mosaic_0001>

<llo_original>
// kernel: tpu_custom_call.1
$region0: #{tpu_custom_call.1}
  #allocation0 [shape = 'u32[]', space=smem, size = 0x4, offset = 0x4, fixed_abs, tag = 'smem constant byte address 0x4 - core index']
  #allocation1 [shape = 'u32[144,128]{1,0:T(1,128)}', space=vmem, size = 0x12000, scoped, tag = 'internal scratch']
  #allocation2 [shape = 'f32[32,1]{1,0:T(8,128)}', space=vmem, size = 0x4000, scoped, tag = 'scratch operand']
  %s0 = inlined_call_operand.vmem [shape: f32[2,4,256], index: 0, kind: input, shape index: {}]
  %s1 = inlined_call_operand.vmem [shape: f32[32,4], index: 1, kind: input, shape index: {}]
  %s2 = inlined_call_operand.vmem [shape: f32[32,1], index: 2, kind: input, shape index: {}]
  %s3 = inlined_call_operand.hbm [shape: f32[2,32,256], index: 3, kind: output, shape index: {0}]
  %s4 = inlined_call_operand.vmem [shape: f32[2,32,1], index: 4, kind: output, shape index: {1}]
  %5 = xla_tuple %s3, %s4
  %s6 = sld [smem:[#allocation0]]
  $region61: #{tpu_custom_call.1} parent=0
    _
  %s8 = ssub.s32 1, %s6
  %s9 = scalar_select 0, %s8, %s6
  $region1: #{tpu_custom_call.1} parent=0
    #allocation3 [shape = 'u8[32768]{0}', space=vmem, size = 0x8000, scoped, tag = 'output window, operand 0']
    #allocation4 [shape = 's32[2]{0}', space=sflag, size = 0x8, scoped, tag = 'scoped memory for tpu_custom_call.1']
    %10 = vsyncpa [#allocation4], 0
    %s11 = scalar_lea.sflag [#allocation4], 1
    %12 = vsyncpa %s11, 0
    loop: start=0, step=1, limit=6
    $region2: #{tpu_custom_call.1} parent=1 // loop_pre_header
      _
    $region3: #{tpu_custom_call.1} parent=1 // loop_header
      %s14 = sphi 0, %s18
      %p15 = scmp.ge.s32.totalorder %s14, 6
      %s21 = sphi 0, %s40
      %s22 = sphi 0, %s36
      %s23 = sphi 0, %s32
      %s24 = sphi 0, %s21
      %s25 = sphi 0, %s22
      %s26 = sphi 0, %s23
      %s27 = sphi 0, %s24
      %s28 = sphi 0, %s25
      %s29 = sphi 0, %s26
      %s45 = sphi 0, %s47
      %s48 = sphi 0, %s45
      %s49 = sphi 0, %s48
      %s65 = sphi 0, %s49
      %s71 = sphi 0, %s73
      %s74 = sphi 0, %s71
      %s75 = sphi 0, %s74
      %s91 = sphi 0, %s75
      %s97 = sphi 0, %s99
      %s100 = sphi 0, %s97
      %s101 = sphi 0, %s100
      %s117 = sphi 0, %s101
      %s127 = sphi 0, %s129
      %s130 = sphi 0, %s127
      %s131 = sphi 0, %s130
      %s147 = sphi 0, %s131
      %s155 = sphi 0, %s157
      %s158 = sphi 0, %s155
      %s159 = sphi 0, %s158
      %s175 = sphi 0, %s159
    $region4: #{tpu_custom_call.1} parent=1 // loop_header_branch
      %17 = sbr.rel (%p15) target = $region8
    $region5: #{tpu_custom_call.1} parent=1 // loop_body
      %s19 = ssub.s32 %s14, 1
      %s20 = ssub.s32 %s14, 2
      %s30 = sadd.s32 1, %s23
      %p31 = scmp.ge.s32.totalorder %s30, 2
      %s32 = scalar_select %p31, 0, %s30
      %s33 = sadd.s32 1, %s22
      %s34 = scalar_select %p31, %s33, %s22
      %p35 = scmp.ge.s32.totalorder %s34, 1
      %s36 = scalar_select %p35, 0, %s34
      %s37 = sadd.s32 1, %s21
      %s38 = scalar_select %p35, %s37, %s21
      %p39 = scmp.ge.s32.totalorder %s38, 2
      %s40 = scalar_select %p39, 0, %s38
      %s41 = ssub.s32 %s21, %s40
      %s42 = ssub.s32 %s23, %s32
      %s43 = sor.u32 %s41, %s42
      %p44 = scmp.eq.s32.totalorder %s43, 0
      %s46 = sadd.s32 %s45, 1
      %s47 = scalar_select %p44, %s45, %s46
      %p50 = pneg %p44
      %p51 = scmp.eq.s32.totalorder %s14, 3
      %p52 = por %p50, %p51
      %p53 = scmp.ne.s32.totalorder %s45, %s48
      %p54 = scmp.eq.s32.totalorder %s14, 0
      %p55 = por %p53, %p54
      %p56 = scmp.ne.s32.totalorder %s45, %s48
      %p57 = scmp.eq.s32.totalorder %s19, 3
      %p58 = por %p56, %p57
      %p59 = scmp.ne.s32.totalorder %s48, %s49
      %p60 = scmp.eq.s32.totalorder %s19, 0
      %p61 = por %p59, %p60
      %p62 = scmp.ne.s32.totalorder %s48, %s49
      %p63 = scmp.eq.s32.totalorder %s20, 3
      %p64 = por %p62, %p63
      %p66 = scmp.ne.s32.totalorder %s49, %s65
      %p67 = scmp.eq.s32.totalorder %s20, 0
      %p68 = por %p66, %p67
      %s69 = ssub.s32 %s22, %s36
      %p70 = scmp.eq.s32.totalorder %s69, 0
      %s72 = sadd.s32 %s71, 1
      %s73 = scalar_select %p70, %s71, %s72
      %p76 = pneg %p70
      %p77 = scmp.eq.s32.totalorder %s14, 3
      %p78 = por %p76, %p77
      %p79 = scmp.ne.s32.totalorder %s71, %s74
      %p80 = scmp.eq.s32.totalorder %s14, 0
      %p81 = por %p79, %p80
      %p82 = scmp.ne.s32.totalorder %s71, %s74
      %p83 = scmp.eq.s32.totalorder %s19, 3
      %p84 = por %p82, %p83
      %p85 = scmp.ne.s32.totalorder %s74, %s75
      %p86 = scmp.eq.s32.totalorder %s19, 0
      %p87 = por %p85, %p86
      %p88 = scmp.ne.s32.totalorder %s74, %s75
      %p89 = scmp.eq.s32.totalorder %s20, 3
      %p90 = por %p88, %p89
      %p92 = scmp.ne.s32.totalorder %s75, %s91
      %p93 = scmp.eq.s32.totalorder %s20, 0
      %p94 = por %p92, %p93
      %s95 = ssub.s32 %s22, %s36
      %p96 = scmp.eq.s32.totalorder %s95, 0
      %s98 = sadd.s32 %s97, 1
      %s99 = scalar_select %p96, %s97, %s98
      %p102 = pneg %p96
      %p103 = scmp.eq.s32.totalorder %s14, 3
      %p104 = por %p102, %p103
      %p105 = scmp.ne.s32.totalorder %s97, %s100
      %p106 = scmp.eq.s32.totalorder %s14, 0
      %p107 = por %p105, %p106
      %p108 = scmp.ne.s32.totalorder %s97, %s100
      %p109 = scmp.eq.s32.totalorder %s19, 3
      %p110 = por %p108, %p109
      %p111 = scmp.ne.s32.totalorder %s100, %s101
      %p112 = scmp.eq.s32.totalorder %s19, 0
      %p113 = por %p111, %p112
      %p114 = scmp.ne.s32.totalorder %s100, %s101
      %p115 = scmp.eq.s32.totalorder %s20, 3
      %p116 = por %p114, %p115
      %p118 = scmp.ne.s32.totalorder %s101, %s117
      %p119 = scmp.eq.s32.totalorder %s20, 0
      %p120 = por %p118, %p119
      %s121 = ssub.s32 %s21, %s40
      %s122 = ssub.s32 %s22, %s36
      %s123 = sor.u32 %s121, %s122
      %s124 = ssub.s32 %s23, %s32
      %s125 = sor.u32 %s123, %s124
      %p126 = scmp.eq.s32.totalorder %s125, 0
      %s128 = sadd.s32 %s127, 1
      %s129 = scalar_select %p126, %s127, %s128
      %p132 = pneg %p126
      %p133 = scmp.eq.s32.totalorder %s14, 3
      %p134 = por %p132, %p133
      %p135 = scmp.ne.s32.totalorder %s127, %s130
      %p136 = scmp.eq.s32.totalorder %s14, 0
      %p137 = por %p135, %p136
      %p138 = scmp.ne.s32.totalorder %s127, %s130
      %p139 = scmp.eq.s32.totalorder %s19, 3
      %p140 = por %p138, %p139
      %p141 = scmp.ne.s32.totalorder %s130, %s131
      %p142 = scmp.eq.s32.totalorder %s19, 0
      %p143 = por %p141, %p142
      %p144 = scmp.ne.s32.totalorder %s130, %s131
      %p145 = scmp.eq.s32.totalorder %s20, 3
      %p146 = por %p144, %p145
      %p148 = scmp.ne.s32.totalorder %s131, %s147
      %p149 = scmp.eq.s32.totalorder %s20, 0
      %p150 = por %p148, %p149
      %s151 = ssub.s32 %s21, %s40
      %s152 = ssub.s32 %s22, %s36
      %s153 = sor.u32 %s151, %s152
      %p154 = scmp.eq.s32.totalorder %s153, 0
      %s156 = sadd.s32 %s155, 1
      %s157 = scalar_select %p154, %s155, %s156
      %p160 = pneg %p154
      %p161 = scmp.eq.s32.totalorder %s14, 3
      %p162 = por %p160, %p161
      %p163 = scmp.ne.s32.totalorder %s155, %s158
      %p164 = scmp.eq.s32.totalorder %s14, 0
      %p165 = por %p163, %p164
      %p166 = scmp.ne.s32.totalorder %s155, %s158
      %p167 = scmp.eq.s32.totalorder %s19, 3
      %p168 = por %p166, %p167
      %p169 = scmp.ne.s32.totalorder %s158, %s159
      %p170 = scmp.eq.s32.totalorder %s19, 0
      %p171 = por %p169, %p170
      %p172 = scmp.ne.s32.totalorder %s158, %s159
      %p173 = scmp.eq.s32.totalorder %s20, 3
      %p174 = por %p172, %p173
      %p176 = scmp.ne.s32.totalorder %s159, %s175
      %p177 = scmp.eq.s32.totalorder %s20, 0
      %p178 = por %p176, %p177
      %p179 = scmp.le.s32.totalorder 1, %s14
      %p180 = scmp.lt.s32.totalorder %s14, 5
      %p181 = pnand %p179, %p180
      %p182 = pneg %p181
      // Predicated region
      $region9: #{tpu_custom_call.1} parent=5 // pred_check
        _
      $region10: #{tpu_custom_call.1} parent=5 // pred_check_branch
        %184 = sbr.rel (%p181) target = $region12
      $region11: #{tpu_custom_call.1} parent=5 // pred_region
        %s185 = ssub.s32 %s14, 1
        // Predicated region
        $region13: #{tpu_custom_call.1} parent=11 // pred_check
          %p186 = pneg %p87
        $region14: #{tpu_custom_call.1} parent=11 // pred_check_branch
          %188 = sbr.rel (%p186) target = $region16
        $region15: #{tpu_custom_call.1} parent=11 // pred_region
          %s189 = smul.u32 4, %s25
          %p190 = scmp.lt.s32.totalorder %s189, 3
          %s191 = scalar_select %p190, %s189, 3
          %s192 = smul.addr %s191, 8
          %s193 = scalar_lea.vmem %s1, %s192
          %s194 = smul.u32 4, %s25
        $region16: #{tpu_custom_call.1} parent=11 // pred_fallthru
          _
        // Predicated region
        $region17: #{tpu_custom_call.1} parent=11 // pred_check
          %p195 = pneg %p113
        $region18: #{tpu_custom_call.1} parent=11 // pred_check_branch
          %197 = sbr.rel (%p195) target = $region20
        $region19: #{tpu_custom_call.1} parent=11 // pred_region
          %s198 = smul.u32 4, %s25
          %p199 = scmp.lt.s32.totalorder %s198, 3
          %s200 = scalar_select %p199, %s198, 3
          %s201 = smul.addr %s200, 8
          %s202 = scalar_lea.vmem %s2, %s201
          %s203 = smul.u32 4, %s25
        $region20: #{tpu_custom_call.1} parent=11 // pred_fallthru
          _
      $region12: #{tpu_custom_call.1} parent=5 // pred_fallthru
        _
      %p204 = scmp.lt.s32.totalorder %s14, 4
      // Predicated region
      $region21: #{tpu_custom_call.1} parent=5 // pred_check
        %p205 = pneg %p204
      $region22: #{tpu_custom_call.1} parent=5 // pred_check_branch
        %207 = sbr.rel (%p205) target = $region24
      $region23: #{tpu_custom_call.1} parent=5 // pred_region
        // Predicated region
        $region25: #{tpu_custom_call.1} parent=23 // pred_check
          %p208 = pneg %p55
        $region26: #{tpu_custom_call.1} parent=23 // pred_check_branch
          %210 = sbr.rel (%p208) target = $region28
        $region27: #{tpu_custom_call.1} parent=23 // pred_region
          %p211 = scmp.lt.s32.totalorder %s21, 1
          %s212 = scalar_select %p211, %s21, 1
          %p213 = scmp.lt.s32.totalorder %s23, 1
          %s214 = scalar_select %p213, %s23, 1
          %s215 = smul.addr %s212, 2
          %s216 = sadd.s32 %s214, %s215
          %s217 = smul.addr %s216, 4
          %s218 = scalar_lea.vmem %s0, %s217
        $region28: #{tpu_custom_call.1} parent=23 // pred_fallthru
          _
      $region24: #{tpu_custom_call.1} parent=5 // pred_fallthru
        _
      %p219 = scmp.le.s32.totalorder 1, %s14
      %p220 = scmp.lt.s32.totalorder %s14, 5
      %p221 = pnand %p219, %p220
      %p222 = pneg %p221
      // Predicated region
      $region29: #{tpu_custom_call.1} parent=5 // pred_check
        _
      $region30: #{tpu_custom_call.1} parent=5 // pred_check_branch
        %224 = sbr.rel (%p221) target = $region32
      $region31: #{tpu_custom_call.1} parent=5 // pred_region
        %s225 = ssub.s32 %s14, 1
        %p226 = scmp.lt.s32.totalorder %s24, 1
        %s227 = scalar_select %p226, %s24, 1
        %p228 = scmp.lt.s32.totalorder %s26, 1
        %s229 = scalar_select %p228, %s26, 1
        %s230 = smul.addr %s227, 2
        %s231 = sadd.s32 %s229, %s230
        %s232 = smul.addr %s231, 4
        %s233 = scalar_lea.vmem %s0, %s232
        %p234 = pneg %p61
        %p235 = pneg %p58
        %s236 = smul.u32 4, %s25
        %p237 = scmp.lt.s32.totalorder %s236, 3
        %s238 = scalar_select %p237, %s236, 3
        %s239 = smul.addr %s238, 8
        %s240 = scalar_lea.vmem %s1, %s239
        %p241 = pneg %p87
        %p242 = pneg %p84
        %s243 = smul.u32 4, %s25
        %p244 = scmp.lt.s32.totalorder %s243, 3
        %s245 = scalar_select %p244, %s243, 3
        %s246 = smul.addr %s245, 8
        %s247 = scalar_lea.vmem %s2, %s246
        %p248 = pneg %p113
        %p249 = pneg %p110
        %p250 = pneg %p143
        %p251 = pneg %p140
        %s252 = sand.u32 %s130, 1
        %s253 = scalar_lea.sflag [#allocation4], %s252
        %s254 = sand.u32 %s130, 1
        %s255 = smul.addr %s254, 32
        %s256 = scalar_lea.vmem [#allocation3], %s255
        %p257 = pneg %p171
        %p258 = pneg %p168
        %s259 = smul.u32 4, %s25
        %p260 = scmp.lt.s32.totalorder %s24, 1
        %s261 = scalar_select %p260, %s24, 1
        %p262 = scmp.lt.s32.totalorder %s259, 3
        %s263 = scalar_select %p262, %s259, 3
        %s264 = smul.addr %s261, 4
        %s265 = sadd.s32 %s263, %s264
        %s266 = smul.addr %s265, 8
        %s267 = scalar_lea.vmem %s4, %s266
        %p268 = scmp.lt.s32.totalorder %s24, 1
        %s269 = scalar_select %p268, %s24, 1
        %p270 = scmp.lt.s32.totalorder %s26, 1
        %s271 = scalar_select %p270, %s26, 1
        %s272 = smul.addr %s269, 2
        %s273 = sadd.s32 %s271, %s272
        %s274 = smul.addr %s273, 4
        %s275 = scalar_lea.vmem %s0, %s274
        %s276 = smul.u32 4, %s25
        %p277 = scmp.lt.s32.totalorder %s276, 3
        %s278 = scalar_select %p277, %s276, 3
        %s279 = smul.addr %s278, 8
        %s280 = scalar_lea.vmem %s1, %s279
        %s281 = smul.u32 4, %s25
        %s282 = smul.u32 4, %s25
        %p283 = scmp.lt.s32.totalorder %s282, 3
        %s284 = scalar_select %p283, %s282, 3
        %s285 = smul.addr %s284, 8
        %s286 = scalar_lea.vmem %s2, %s285
        %s287 = smul.u32 4, %s25
        %s288 = smul.u32 4, %s25
        %s289 = smul.u32 4, %s25
        %p290 = scmp.lt.s32.totalorder %s24, 1
        %s291 = scalar_select %p290, %s24, 1
        %p292 = scmp.lt.s32.totalorder %s289, 3
        %s293 = scalar_select %p292, %s289, 3
        %s294 = smul.addr %s291, 4
        %s295 = sadd.s32 %s293, %s294
        %s296 = smul.addr %s295, 8
        %s297 = scalar_lea.vmem %s4, %s296
        %s298 = smul.u32 4, %s25
        %p299 = scmp.eq.s32.totalorder %s26, 0
        // Predicated region
        $region33: #{tpu_custom_call.1} parent=31 // pred_check
          %p300 = pneg %p299
        $region34: #{tpu_custom_call.1} parent=31 // pred_check_branch
          %302 = sbr.rel (%p300) target = $region36
        $region35: #{tpu_custom_call.1} parent=31 // pred_region
          %vm303 = vcmask 7168
          %304 = vst.msk [vmem:[#allocation2] sm:$0xff] %vm303, 0.0
          %305 = vst.msk [vmem:[#allocation2 + $0x8] sm:$0xff] %vm303, 0.0
          %306 = vst.msk [vmem:[#allocation2 + $0x10] sm:$0xff] %vm303, 0.0
          %307 = vst.msk [vmem:[#allocation2 + $0x18] sm:$0xff] %vm303, 0.0
        $region36: #{tpu_custom_call.1} parent=31 // pred_fallthru
          _
        %v308 = vld [vmem:[%s275] sm:$0xf]
        %v309 = vld [vmem:[%s280] sm:$0xff]
        %v310 = vld [vmem:[%s280 + $0x8] sm:$0xff]
        %v311 = vld [vmem:[%s280 + $0x10] sm:$0xff]
        %v312 = vld [vmem:[%s280 + $0x18] sm:$0xff]
        %v313 = vld [vmem:[%s286] sm:$0xff]
        %v314 = vld [vmem:[%s286 + $0x8] sm:$0xff]
        %v315 = vld [vmem:[%s286 + $0x10] sm:$0xff]
        %v316 = vld [vmem:[%s286 + $0x18] sm:$0xff]
        %318 = vset.pattern.permute.xlu0 0
        %319 = vperm.xlu0 %318, %v313
        %v320 = vpop.permute.xlu0 %319
        %323 = vset.pattern.permute.xlu0 0
        %324 = vperm.xlu0 %323, %v314
        %v325 = vpop.permute.xlu0 %324
        %328 = vset.pattern.permute.xlu0 0
        %329 = vperm.xlu0 %328, %v315
        %v330 = vpop.permute.xlu0 %329
        %333 = vset.pattern.permute.xlu0 0
        %334 = vperm.xlu0 %333, %v316
        %v335 = vpop.permute.xlu0 %334
        %vm337 = vcmask 31744
        %v339 = vsel %vm337, %v309, 0
        %v342 = vsel %vm337, %v310, 0
        %v345 = vsel %vm337, %v311, 0
        %v348 = vsel %vm337, %v312, 0
        %vm350 = vcmask 1043456
        %v352 = vsel %vm350, %v308, 0
        %354 = vmatprep.subr.mxu0 0.0
        %355 = vmatpush1.msra.mxu0 %v352
        %356 = vmatprep.subr.mxu0 0.0
        %357 = vmatpush1.msra.mxu0 0.0
        %358 = vmatprep.subr.mxu0 0.0
        %359 = vmatpush1.msra.mxu0 0.0
        %360 = vmatprep.subr.mxu0 0.0
        %361 = vmatpush1.msra.mxu0 0.0
        %362 = vmatprep.subr.mxu0 0.0
        %363 = vmatpush1.msra.mxu0 0.0
        %364 = vmatprep.subr.mxu0 0.0
        %365 = vmatpush1.msra.mxu0 0.0
        %366 = vmatprep.subr.mxu0 0.0
        %367 = vmatpush1.msra.mxu0 0.0
        %368 = vmatprep.subr.mxu0 0.0
        %369 = vmatpush1.msra.mxu0 0.0
        %370 = vmatprep.subr.mxu0 0.0
        %371 = vmatpush1.msra.mxu0 0.0
        %372 = vmatprep.subr.mxu0 0.0
        %373 = vmatpush1.msra.mxu0 0.0
        %374 = vmatprep.subr.mxu0 0.0
        %375 = vmatpush1.msra.mxu0 0.0
        %376 = vmatprep.subr.mxu0 0.0
        %377 = vmatpush1.msra.mxu0 0.0
        %378 = vmatprep.subr.mxu0 0.0
        %379 = vmatpush1.msra.mxu0 0.0
        %380 = vmatprep.subr.mxu0 0.0
        %381 = vmatpush1.msra.mxu0 0.0
        %382 = vmatprep.subr.mxu0 0.0
        %383 = vmatpush1.msra.mxu0 0.0
        %384 = vmatprep.subr.mxu0 0.0
        %385 = vmatpush1.msra.mxu0 0.0
        %386 = vmatprep.subr.mxu0 0.0
        %387 = vmatpush1.msra.mxu0 0.0
        %388 = vmatprep.subr.mxu0 0.0
        %389 = vmatpush1.msra.mxu0 0.0
        %390 = vmatprep.subr.mxu0 0.0
        %391 = vmatpush1.msra.mxu0 0.0
        %392 = vmatprep.subr.mxu0 0.0
        %393 = vmatpush1.msra.mxu0 0.0
        %394 = vmatprep.subr.mxu0 0.0
        %395 = vmatpush1.msra.mxu0 0.0
        %396 = vmatprep.subr.mxu0 0.0
        %397 = vmatpush1.msra.mxu0 0.0
        %398 = vmatprep.subr.mxu0 0.0
        %399 = vmatpush1.msra.mxu0 0.0
        %400 = vmatprep.subr.mxu0 0.0
        %401 = vmatpush1.msra.mxu0 0.0
        %402 = vmatprep.subr.mxu0 0.0
        %403 = vmatpush1.msra.mxu0 0.0
        %404 = vmatprep.subr.mxu0 0.0
        %405 = vmatpush1.msra.mxu0 0.0
        %406 = vmatprep.subr.mxu0 0.0
        %407 = vmatpush1.msra.mxu0 0.0
        %408 = vmatprep.subr.mxu0 0.0
        %409 = vmatpush1.msra.mxu0 0.0
        %410 = vmatprep.subr.mxu0 0.0
        %411 = vmatpush1.msra.mxu0 0.0
        %412 = vmatprep.subr.mxu0 0.0
        %413 = vmatpush1.msra.mxu0 0.0
        %414 = vmatprep.subr.mxu0 0.0
        %415 = vmatpush1.msra.mxu0 0.0
        %416 = vmatprep.subr.mxu0 0.0
        %417 = vmatpush1.msra.mxu0 0.0
        %418 = vmatprep.mubr.f32.mxu0 0.0
        %419 = vmatmul.mubr.f32.gmra.mrb[0].mxu0 %v339
        %v420 = vpop.f32.mrb[0].mxu0
        %v421 = vadd.f32 %v320, %v420
        %v422 = vpop.f32.mrb[0].mxu0
        %423 = vmatprep.mubr.f32.mxu0 0.0
        %424 = vmatmul.mubr.f32.gmra.mrb[0].mxu0 %v342
        %v425 = vpop.f32.mrb[0].mxu0
        %v426 = vadd.f32 %v325, %v425
        %v427 = vpop.f32.mrb[0].mxu0
        %428 = vmatprep.mubr.f32.mxu0 0.0
        %429 = vmatmul.mubr.f32.gmra.mrb[0].mxu0 %v345
        %v430 = vpop.f32.mrb[0].mxu0
        %v431 = vadd.f32 %v330, %v430
        %v432 = vpop.f32.mrb[0].mxu0
        %433 = vmatprep.mubr.f32.mxu0 0.0
        %434 = vmatmul.mubr.f32.gmra.mrb[0].mxu0 %v348
        %v435 = vpop.f32.mrb[0].mxu0
        %v436 = vadd.f32 %v335, %v435
        %v437 = vpop.f32.mrb[0].mxu0
        %438 = vdwg.mxu0
        %v439 = vmax.f32 %v421, 0.0
        %v440 = vmax.f32 %v426, 0.0
        %v441 = vmax.f32 %v431, 0.0
        %v442 = vmax.f32 %v436, 0.0
        %443 = vst [vmem:[%s256] sm:$0xff] %v439
        %444 = vst [vmem:[%s256 + $0x8] sm:$0xff] %v440
        %445 = vst [vmem:[%s256 + $0x10] sm:$0xff] %v441
        %446 = vst [vmem:[%s256 + $0x18] sm:$0xff] %v442
        %v447 = vld [vmem:[#allocation2] sm:$0xff]
        %v448 = vld [vmem:[#allocation2 + $0x8] sm:$0xff]
        %v449 = vld [vmem:[#allocation2 + $0x10] sm:$0xff]
        %v450 = vld [vmem:[#allocation2 + $0x18] sm:$0xff]
        %451 = vadd.xlane.f32.xlu0 %v439
        %v452 = vpop.xlane.xlu0 %451
        %453 = vadd.xlane.f32.xlu0 %v440
        %v454 = vpop.xlane.xlu0 %453
        %455 = vadd.xlane.f32.xlu0 %v441
        %v456 = vpop.xlane.xlu0 %455
        %457 = vadd.xlane.f32.xlu0 %v442
        %v458 = vpop.xlane.xlu0 %457
        %v459 = vadd.f32 %v447, %v452
        %v460 = vadd.f32 %v448, %v454
        %v461 = vadd.f32 %v449, %v456
        %v462 = vadd.f32 %v450, %v458
        %vm463 = vcmask 7168
        %464 = vst.msk [vmem:[#allocation2] sm:$0xff] %vm463, %v459
        %465 = vst.msk [vmem:[#allocation2 + $0x8] sm:$0xff] %vm463, %v460
        %466 = vst.msk [vmem:[#allocation2 + $0x10] sm:$0xff] %vm463, %v461
        %467 = vst.msk [vmem:[#allocation2 + $0x18] sm:$0xff] %vm463, %v462
        %p468 = scmp.eq.s32.totalorder %s26, 1
        // Predicated region
        $region37: #{tpu_custom_call.1} parent=31 // pred_check
          %p469 = pneg %p468
        $region38: #{tpu_custom_call.1} parent=31 // pred_check_branch
          %471 = sbr.rel (%p469) target = $region40
        $region39: #{tpu_custom_call.1} parent=31 // pred_region
          %v472 = vld [vmem:[#allocation2] sm:$0xff]
          %v473 = vld [vmem:[#allocation2 + $0x8] sm:$0xff]
          %v474 = vld [vmem:[#allocation2 + $0x10] sm:$0xff]
          %v475 = vld [vmem:[#allocation2 + $0x18] sm:$0xff]
          %v476 = vmul.f32 %v472, 0.00390625
          %v477 = vmul.f32 %v473, 0.00390625
          %v478 = vmul.f32 %v474, 0.00390625
          %v479 = vmul.f32 %v475, 0.00390625
          %480 = vst.msk [vmem:[%s297] sm:$0xff] %vm463, %v476
          %481 = vst.msk [vmem:[%s297 + $0x8] sm:$0xff] %vm463, %v477
          %482 = vst.msk [vmem:[%s297 + $0x10] sm:$0xff] %vm463, %v478
          %483 = vst.msk [vmem:[%s297 + $0x18] sm:$0xff] %vm463, %v479
        $region40: #{tpu_custom_call.1} parent=31 // pred_fallthru
          _
        %s484 = sand.u32 %s130, 1
        %s485 = scalar_lea.sflag [#allocation4], %s484
        %s486 = sand.u32 %s130, 1
        %s487 = smul.addr %s486, 32
        %s488 = scalar_lea.vmem [#allocation3], %s487
        %s489 = smul.u32 4, %s25
        %p490 = scmp.lt.s32.totalorder %s24, 1
        %s491 = scalar_select %p490, %s24, 1
        %p492 = scmp.lt.s32.totalorder %s489, 3
        %s493 = scalar_select %p492, %s489, 3
        %s494 = smul.addr %s491, 4
        %s495 = sadd.s32 %s493, %s494
        %s496 = smul.addr %s495, 8
        %s497 = scalar_lea.vmem %s4, %s496
        // Predicated region
        $region41: #{tpu_custom_call.1} parent=31 // pred_check
          %p498 = pneg %p140
        $region42: #{tpu_custom_call.1} parent=31 // pred_check_branch
          %500 = sbr.rel (%p498) target = $region44
        $region43: #{tpu_custom_call.1} parent=31 // pred_region
          %s501 = smul.u32 4, %s25
          %s503 = ssub.s32 512, 512
          %504 = vsyncadd %s485, %s503
          %s505 = smul.addr %s501, 2
          %s506 = sadd.s32 %s26, %s505
          %s507 = smul.addr %s24, 8
          %s508 = sadd.s32 %s506, %s507
          %s509 = smul.addr %s508, 128
          %s510 = scalar_lea.hbm %s3, %s509
          %s511 = sshll.u32 %s488, 4
          %s512 = int_to_ptr.vmem [resolvable:$true] %s511
          %517 = dma.vmem_to_hbm [thread:$0]  %s512, 512, %s510, %s485, 128, 256, 8
        $region44: #{tpu_custom_call.1} parent=31 // pred_fallthru
          _
        // Predicated region
        $region45: #{tpu_custom_call.1} parent=31 // pred_check
          %p518 = pneg %p168
        $region46: #{tpu_custom_call.1} parent=31 // pred_check_branch
          %520 = sbr.rel (%p518) target = $region48
        $region47: #{tpu_custom_call.1} parent=31 // pred_region
          %s521 = smul.u32 4, %s25
        $region48: #{tpu_custom_call.1} parent=31 // pred_fallthru
          _
      $region32: #{tpu_custom_call.1} parent=5 // pred_fallthru
        _
      %p522 = scmp.le.s32.totalorder 2, %s14
      // Predicated region
      $region49: #{tpu_custom_call.1} parent=5 // pred_check
        %p523 = pneg %p522
      $region50: #{tpu_custom_call.1} parent=5 // pred_check_branch
        %525 = sbr.rel (%p523) target = $region52
      $region51: #{tpu_custom_call.1} parent=5 // pred_region
        %s526 = ssub.s32 %s14, 2
        // Predicated region
        $region53: #{tpu_custom_call.1} parent=51 // pred_check
          %p527 = pneg %p146
        $region54: #{tpu_custom_call.1} parent=51 // pred_check_branch
          %529 = sbr.rel (%p527) target = $region56
        $region55: #{tpu_custom_call.1} parent=51 // pred_region
          %s530 = sand.u32 %s131, 1
          %s531 = scalar_lea.sflag [#allocation4], %s530
          %s532 = sand.u32 %s131, 1
          %s533 = smul.addr %s532, 32
          %s534 = scalar_lea.vmem [#allocation3], %s533
          %535 = dma.done %s531, 512
        $region56: #{tpu_custom_call.1} parent=51 // pred_fallthru
          _
        // Predicated region
        $region57: #{tpu_custom_call.1} parent=51 // pred_check
          %p536 = pneg %p174
        $region58: #{tpu_custom_call.1} parent=51 // pred_check_branch
          %538 = sbr.rel (%p536) target = $region60
        $region59: #{tpu_custom_call.1} parent=51 // pred_region
          %s539 = smul.u32 4, %s28
          %p540 = scmp.lt.s32.totalorder %s27, 1
          %s541 = scalar_select %p540, %s27, 1
          %p542 = scmp.lt.s32.totalorder %s539, 3
          %s543 = scalar_select %p542, %s539, 3
          %s544 = smul.addr %s541, 4
          %s545 = sadd.s32 %s543, %s544
          %s546 = smul.addr %s545, 8
          %s547 = scalar_lea.vmem %s4, %s546
        $region60: #{tpu_custom_call.1} parent=51 // pred_fallthru
          _
      $region52: #{tpu_custom_call.1} parent=5 // pred_fallthru
        _
    $region6: #{tpu_custom_call.1} parent=1 // loop_footer
      %s18 = sadd.s32 1, %s14
    $region7: #{tpu_custom_call.1} parent=1 // loop_footer_branch
      %13 = sbr.rel target = $region3
    $region8: #{tpu_custom_call.1} parent=1 // loop_exit
      _
    %548 = vsyncpa [#allocation4], 1
    %s549 = scalar_lea.sflag [#allocation4], 1
    %550 = vsyncpa %s549, 1

</llo_original>
